<compile_context>
chip_gen: v5e
topology: v5e:2x2
jax: 0.10.0
libtpu: 0.0.40
codegen_flags: <defaults>
</compile_context>

<pallas_src>
import jax
import jax.numpy as jnp
from jax.experimental import pallas as pl
from jax.experimental.pallas import tpu as pltpu

# ---- model hyper-params (small, consistent with the module) -----------------
B = 2                       # batch
N = 8                       # tokens
DIM = 32                    # embedding dim C
HEADS = 4                   # num_heads (dim % num_heads == 0)
HEAD_DIM = DIM // HEADS     # 8
SCALE = HEAD_DIM ** -0.5
T = B * N                   # flattened token count
G = HEADS * B               # combined (head, batch) einsum batch axis

# Production lever (v6e / v7x): set to jnp.bfloat16 for the native MXU path
# (softmax math stays f32 either way).
MXU_DTYPE = jnp.float32


# --------------------------------- kernel ------------------------------------
def attention_kernel(x_ref, wqkv_ref, wp_ref, bias_ref, o_ref):
    # x_ref    : (T, C)        flattened tokens
    # wqkv_ref : (H, C, 3*hd)  merged per-head [q | k | v] weights, q pre-scaled
    # wp_ref   : (H, hd, C)    per-head output-projection weights
    # bias_ref : (1, C)        proj bias
    # o_ref    : (T, C)
    x = x_ref[...].astype(MXU_DTYPE)                           # (T, C)

    # --- single head-batched QKV projection (one MXU einsum, 4 kernel inputs).
    # x is replicated over the small head axis so this stays a plain
    # head-batched matmul; the implicit-broadcast form 'tc,hcd->htd' would
    # lower to a mixed-rank dot_general that the Mosaic backend does not
    # support, and a post-matmul head transpose would cost a relayout instead.
    xh = jnp.broadcast_to(x, (HEADS, T, DIM))                  # (H, T, C)
    qkv = jnp.einsum('htc,hce->hte', xh, wqkv_ref[...].astype(MXU_DTYPE),
                     preferred_element_type=jnp.float32)       # (H, T, 3*hd)

    # --- static 8-wide lane-chunk split of Q/K/V, then fold the batch into the
    # einsum batch axis: (H, T, hd) -> (H*B, N, hd) is a sublane-tile-aligned
    # regroup (vregs relabelled, no data movement).
    q = qkv[:, :, 0 * HEAD_DIM:1 * HEAD_DIM].reshape(G, N, HEAD_DIM)
    k = qkv[:, :, 1 * HEAD_DIM:2 * HEAD_DIM].reshape(G, N, HEAD_DIM)
    v = qkv[:, :, 2 * HEAD_DIM:3 * HEAD_DIM].reshape(G, N, HEAD_DIM)

    # --- one batched score / softmax / AV chain over all heads*batches.
    # (SCALE already folded into the Q weight columns at parameter prep.)
    s = jnp.einsum('gnd,gmd->gnm', q.astype(MXU_DTYPE), k.astype(MXU_DTYPE),
                   preferred_element_type=jnp.float32)          # (G, N, N)
    s = s - jnp.max(s, axis=-1, keepdims=True)                  # stable softmax (f32)
    e = jnp.exp(s)
    p = e * pl.reciprocal(jnp.sum(e, axis=-1, keepdims=True), approx=True)
    o = jnp.einsum('gnm,gmd->gnd', p.astype(MXU_DTYPE), v.astype(MXU_DTYPE),
                   preferred_element_type=jnp.float32)          # (G, N, hd)

    # --- output projection.  Head-batched matmul followed by a leading-axis
    # sum (pure VPU adds on ~8 vregs; no XLU, no (T, C) head-concat relayout).
    # TODO(synk): replace with einsum('htd,hdc->tc', ...) once Mosaic supports
    # dot_general with two contracting dimensions.
    o = o.reshape(HEADS, T, HEAD_DIM)                           # tile-aligned regroup
    partial = jnp.einsum('htd,hdc->htc', o.astype(MXU_DTYPE),
                         wp_ref[...].astype(MXU_DTYPE),
                         preferred_element_type=jnp.float32)    # (H, T, C)
    o_ref[...] = jnp.sum(partial, axis=0) + bias_ref[...]       # (T, C)


# -------------------------------- wrapper -------------------------------------
def prep_params(qkv_w, proj_w, proj_b):
    """One-time parameter prep (layout plumbing + scale folding, not per-call work
    in a real model)."""
    # qkv_w: (C, 3C) in (in, out) layout, columns ordered [q | k | v], and
    # head-major within each component (col = comp*C + h*hd + d).
    wq = qkv_w[:, 0 * DIM:1 * DIM].reshape(DIM, HEADS, HEAD_DIM) * SCALE  # fold scale once
    wk = qkv_w[:, 1 * DIM:2 * DIM].reshape(DIM, HEADS, HEAD_DIM)
    wv = qkv_w[:, 2 * DIM:3 * DIM].reshape(DIM, HEADS, HEAD_DIM)
    wqkv = jnp.transpose(jnp.concatenate([wq, wk, wv], axis=-1), (1, 0, 2))  # (H, C, 3*hd)
    wp = proj_w.reshape(HEADS, HEAD_DIM, DIM)                               # (H, hd, C)
    bias = proj_b.reshape(1, DIM)                                           # (1, C)
    return wqkv, wp, bias


def attention(x, qkv_w, proj_w, proj_b):
    """x: (B, N, C); qkv_w: (C, 3C) [= W^T, (in,out)]; proj_w: (C, C); proj_b: (C,)."""
    wqkv, wp, bias = prep_params(qkv_w, proj_w, proj_b)
    x2d = x.reshape(T, DIM)

    vmem = pl.BlockSpec(memory_space=pltpu.MemorySpace.VMEM)
    out2d = pl.pallas_call(
        attention_kernel,
        out_shape=jax.ShapeDtypeStruct((T, DIM), jnp.float32),
        in_specs=[vmem, vmem, vmem, vmem],
        out_specs=vmem,
    )(x2d, wqkv, wp, bias)
    return out2d.reshape(B, N, DIM)


# --------------------------- pure-JAX reference --------------------------------
def reference(x, qkv_w, proj_w, proj_b):
    b, n, c = x.shape
    qkv = x @ qkv_w                                           # (B, N, 3C)
    qkv = qkv.reshape(b, n, 3, HEADS, HEAD_DIM).transpose(2, 0, 3, 1, 4)
    q, k, v = qkv[0], qkv[1], qkv[2]                          # (B, H, N, hd)
    s = (q * SCALE) @ jnp.swapaxes(k, -2, -1)                 # (B, H, N, N)
    a = jax.nn.softmax(s, axis=-1)
    o = (a @ v).transpose(0, 2, 1, 3).reshape(b, n, c)        # (B, N, C)
    return o @ proj_w + proj_b


# --------------------------------- main ----------------------------------------
if __name__ == "__main__":
    key = jax.random.PRNGKey(0)
    k0, k1, k2, k3 = jax.random.split(key, 4)

    x = jax.random.normal(k0, (B, N, DIM), dtype=jnp.float32)
    qkv_w = 0.02 * jax.random.normal(k1, (DIM, 3 * DIM), dtype=jnp.float32)
    proj_w = 0.02 * jax.random.normal(k2, (DIM, DIM), dtype=jnp.float32)
    proj_b = 0.01 * jax.random.normal(k3, (DIM,), dtype=jnp.float32)

    out = attention(x, qkv_w, proj_w, proj_b)
    out = jax.block_until_ready(out)

    ref = reference(x, qkv_w, proj_w, proj_b)
    assert out.shape == (B, N, DIM)
    assert jnp.allclose(out, ref, atol=2e-4, rtol=2e-4), (
        f"max abs diff {jnp.max(jnp.abs(out - ref))}")

    print("KERNEL_OK")
</pallas_src>

<mosaic_0001>
module attributes {stable_mosaic.version = 11 : i64} {
  func.func @attention_kernel(%arg0: memref<16x32xf32, #tpu.memory_space<vmem>>, %arg1: memref<4x32x24xf32, #tpu.memory_space<vmem>>, %arg2: memref<4x8x32xf32, #tpu.memory_space<vmem>>, %arg3: memref<1x32xf32, #tpu.memory_space<vmem>>, %arg4: memref<16x32xf32, #tpu.memory_space<vmem>>) attributes {dimension_semantics = [], scalar_prefetch = 0 : i64, scratch_operands = 0 : i64, tpu.core_type = #tpu.core_type<tc>} {
    %c0 = arith.constant 0 : index
    %c0_0 = arith.constant 0 : index
    %0 = vector.load %arg0[%c0, %c0_0] : memref<16x32xf32, #tpu.memory_space<vmem>>, vector<16x32xf32>
    %1 = vector.shape_cast %0 : vector<16x32xf32> to vector<1x16x32xf32>
    %2 = vector.broadcast %1 : vector<1x16x32xf32> to vector<4x16x32xf32>
    %c0_1 = arith.constant 0 : index
    %c0_2 = arith.constant 0 : index
    %c0_3 = arith.constant 0 : index
    %3 = vector.load %arg1[%c0_1, %c0_2, %c0_3] : memref<4x32x24xf32, #tpu.memory_space<vmem>>, vector<4x32x24xf32>
    "tpu.trace_start"() <{level = 10 : i32, message = "htc,hce->hte"}> : () -> ()
    %cst = arith.constant dense<0.000000e+00> : vector<4x16x24xf32>
    %4 = tpu.matmul %2, %3, %cst {dimension_numbers = #tpu.dot_dimension_numbers<[2], [1], [1], [2], [0, 0, 0, 1, 1, 2], [0], [0]>} : vector<4x16x32xf32>, vector<4x32x24xf32>, vector<4x16x24xf32> -> vector<4x16x24xf32>
    "tpu.trace_stop"() : () -> ()
    %5 = vector.extract_strided_slice %4 {offsets = [0, 0, 0], sizes = [4, 16, 8], strides = [1, 1, 1]} : vector<4x16x24xf32> to vector<4x16x8xf32>
    %6 = vector.shape_cast %5 : vector<4x16x8xf32> to vector<8x8x8xf32>
    %7 = vector.extract_strided_slice %4 {offsets = [0, 0, 8], sizes = [4, 16, 8], strides = [1, 1, 1]} : vector<4x16x24xf32> to vector<4x16x8xf32>
    %8 = vector.shape_cast %7 : vector<4x16x8xf32> to vector<8x8x8xf32>
    %9 = vector.extract_strided_slice %4 {offsets = [0, 0, 16], sizes = [4, 16, 8], strides = [1, 1, 1]} : vector<4x16x24xf32> to vector<4x16x8xf32>
    %10 = vector.shape_cast %9 : vector<4x16x8xf32> to vector<8x8x8xf32>
    "tpu.trace_start"() <{level = 10 : i32, message = "gnd,gmd->gnm"}> : () -> ()
    %cst_4 = arith.constant dense<0.000000e+00> : vector<8x8x8xf32>
    %11 = tpu.matmul %6, %8, %cst_4 {dimension_numbers = #tpu.dot_dimension_numbers<[2], [2], [1], [1], [0, 0, 0, 1, 1, 1], [0], [0]>} : vector<8x8x8xf32>, vector<8x8x8xf32>, vector<8x8x8xf32> -> vector<8x8x8xf32>
    "tpu.trace_stop"() : () -> ()
    %cst_5 = arith.constant dense<0xFF800000> : vector<8x8xf32>
    %12 = vector.multi_reduction <maximumf>, %11, %cst_5 [2] : vector<8x8x8xf32> to vector<8x8xf32>
    %13 = vector.shape_cast %12 : vector<8x8xf32> to vector<8x8x1xf32>
    %14 = vector.broadcast %13 : vector<8x8x1xf32> to vector<8x8x8xf32>
    %15 = arith.subf %11, %14 : vector<8x8x8xf32>
    %16 = math.exp %15 : vector<8x8x8xf32>
    %cst_6 = arith.constant dense<0.000000e+00> : vector<8x8xf32>
    %17 = vector.multi_reduction <add>, %16, %cst_6 [2] : vector<8x8x8xf32> to vector<8x8xf32>
    %18 = vector.shape_cast %17 : vector<8x8xf32> to vector<8x8x1xf32>
    %19 = tpu.reciprocal %18 {approx = true} : vector<8x8x1xf32> -> vector<8x8x1xf32>
    %20 = vector.broadcast %19 : vector<8x8x1xf32> to vector<8x8x8xf32>
    %21 = arith.mulf %16, %20 : vector<8x8x8xf32>
    "tpu.trace_start"() <{level = 10 : i32, message = "gnm,gmd->gnd"}> : () -> ()
    %cst_7 = arith.constant dense<0.000000e+00> : vector<8x8x8xf32>
    %22 = tpu.matmul %21, %10, %cst_7 {dimension_numbers = #tpu.dot_dimension_numbers<[2], [1], [1], [2], [0, 0, 0, 1, 1, 2], [0], [0]>} : vector<8x8x8xf32>, vector<8x8x8xf32>, vector<8x8x8xf32> -> vector<8x8x8xf32>
    "tpu.trace_stop"() : () -> ()
    %23 = vector.shape_cast %22 : vector<8x8x8xf32> to vector<4x16x8xf32>
    %c0_8 = arith.constant 0 : index
    %c0_9 = arith.constant 0 : index
    %c0_10 = arith.constant 0 : index
    %24 = vector.load %arg2[%c0_8, %c0_9, %c0_10] : memref<4x8x32xf32, #tpu.memory_space<vmem>>, vector<4x8x32xf32>
    "tpu.trace_start"() <{level = 10 : i32, message = "htd,hdc->htc"}> : () -> ()
    %cst_11 = arith.constant dense<0.000000e+00> : vector<4x16x32xf32>
    %25 = tpu.matmul %23, %24, %cst_11 {dimension_numbers = #tpu.dot_dimension_numbers<[2], [1], [1], [2], [0, 0, 0, 1, 1, 2], [0], [0]>} : vector<4x16x8xf32>, vector<4x8x32xf32>, vector<4x16x32xf32> -> vector<4x16x32xf32>
    "tpu.trace_stop"() : () -> ()
    %cst_12 = arith.constant dense<0.000000e+00> : vector<16x32xf32>
    %26 = vector.multi_reduction <add>, %25, %cst_12 [0] : vector<4x16x32xf32> to vector<16x32xf32>
    %c0_13 = arith.constant 0 : index
    %c0_14 = arith.constant 0 : index
    %27 = vector.load %arg3[%c0_13, %c0_14] : memref<1x32xf32, #tpu.memory_space<vmem>>, vector<1x32xf32>
    %28 = vector.broadcast %27 : vector<1x32xf32> to vector<16x32xf32>
    %29 = arith.addf %26, %28 : vector<16x32xf32>
    %c0_15 = arith.constant 0 : index
    %c0_16 = arith.constant 0 : index
    %30 = vector.load %arg4[%c0_15, %c0_16] : memref<16x32xf32, #tpu.memory_space<vmem>>, vector<16x32xf32>
    tpu.vector_store %arg4[%c0_15, %c0_16], %29 {strides = array<i32>} : memref<16x32xf32, #tpu.memory_space<vmem>>, vector<16x32xf32>,
    return
  }
}

</mosaic_0001>

<llo_original>
// kernel: tpu_custom_call.1
$region0: #{tpu_custom_call.1}
  #allocation0 [shape = 'u32[]', space=smem, size = 0x4, offset = 0x4, fixed_abs, tag = 'smem constant byte address 0x4 - core index']
  #allocation1 [shape = 'u32[72,128]{1,0:T(1,128)}', space=vmem, size = 0x9000, scoped, tag = 'internal scratch']
  %s0 = inlined_call_operand.vmem [shape: f32[16,32], index: 0, kind: input, shape index: {}]
  %s1 = inlined_call_operand.vmem [shape: f32[4,32,24], index: 1, kind: input, shape index: {}]
  %s2 = inlined_call_operand.vmem [shape: f32[4,8,32], index: 2, kind: input, shape index: {}]
  %s3 = inlined_call_operand.vmem [shape: f32[1,32], index: 3, kind: input, shape index: {}]
  %s4 = inlined_call_operand.hbm [shape: f32[16,32], index: 4, kind: output, shape index: {}]
  %s5 = sld [smem:[#allocation0]]
  $region26: #{tpu_custom_call.1} parent=0
    _
  %s7 = ssub.s32 1, %s5
  %s8 = scalar_select 0, %s7, %s5
  $region1: #{tpu_custom_call.1} parent=0
    #allocation2 [shape = 'u8[8192]{0}', space=vmem, size = 0x2000, scoped, tag = 'output window, operand 0, single buffered']
    #allocation3 [shape = 's32[1]{0}', space=sflag, size = 0x4, scoped, tag = 'scoped memory for tpu_custom_call.1']
    %9 = vsyncpa [#allocation3], 0
    // Predicated region
    $region2: #{tpu_custom_call.1} parent=1 // pred_check
      _
    $region3: #{tpu_custom_call.1} parent=1 // pred_check_branch
      %11 = sbr.rel (0) target = $region5
    $region4: #{tpu_custom_call.1} parent=1 // pred_region
      _
    $region5: #{tpu_custom_call.1} parent=1 // pred_fallthru
      _
    // Predicated region
    $region6: #{tpu_custom_call.1} parent=1 // pred_check
      _
    $region7: #{tpu_custom_call.1} parent=1 // pred_check_branch
      %13 = sbr.rel (0) target = $region9
    $region8: #{tpu_custom_call.1} parent=1 // pred_region
      _
    $region9: #{tpu_custom_call.1} parent=1 // pred_fallthru
      _
    // Predicated region
    $region10: #{tpu_custom_call.1} parent=1 // pred_check
      _
    $region11: #{tpu_custom_call.1} parent=1 // pred_check_branch
      %15 = sbr.rel (0) target = $region13
    $region12: #{tpu_custom_call.1} parent=1 // pred_region
      _
    $region13: #{tpu_custom_call.1} parent=1 // pred_fallthru
      _
    // Predicated region
    $region14: #{tpu_custom_call.1} parent=1 // pred_check
      _
    $region15: #{tpu_custom_call.1} parent=1 // pred_check_branch
      %17 = sbr.rel (0) target = $region17
    $region16: #{tpu_custom_call.1} parent=1 // pred_region
      _
    $region17: #{tpu_custom_call.1} parent=1 // pred_fallthru
      _
    %v18 = vld [vmem:[%s0] sm:$0xff]
    %v19 = vld [vmem:[%s0 + $0x8] sm:$0xff]
    %v20 = vld [vmem:[%s1] sm:$0xff]
    %v21 = vld [vmem:[%s1 + $0x8] sm:$0xff]
    %v22 = vld [vmem:[%s1 + $0x10] sm:$0xff]
    %v23 = vld [vmem:[%s1 + $0x18] sm:$0xff]
    %v24 = vld [vmem:[%s1 + $0x20] sm:$0xff]
    %v25 = vld [vmem:[%s1 + $0x28] sm:$0xff]
    %v26 = vld [vmem:[%s1 + $0x30] sm:$0xff]
    %v27 = vld [vmem:[%s1 + $0x38] sm:$0xff]
    %v28 = vld [vmem:[%s1 + $0x40] sm:$0xff]
    %v29 = vld [vmem:[%s1 + $0x48] sm:$0xff]
    %v30 = vld [vmem:[%s1 + $0x50] sm:$0xff]
    %v31 = vld [vmem:[%s1 + $0x58] sm:$0xff]
    %v32 = vld [vmem:[%s1 + $0x60] sm:$0xff]
    %v33 = vld [vmem:[%s1 + $0x68] sm:$0xff]
    %v34 = vld [vmem:[%s1 + $0x70] sm:$0xff]
    %v35 = vld [vmem:[%s1 + $0x78] sm:$0xff]
    %vm36 = vcmask 261120
    %v38 = vsel %vm36, %v18, 0
    %v41 = vsel %vm36, %v19, 0
    %43 = vmatpush.msra.mxu0 0.0
    %44 = vmatpush.msra.mxu0 0.0
    %45 = vmatpush.msra.mxu0 0.0
    %46 = vmatpush.msra.mxu0 0.0
    %47 = vmatpush.msra.mxu0 0.0
    %48 = vmatpush.msra.mxu0 0.0
    %49 = vmatpush.msra.mxu0 0.0
    %50 = vmatpush.msra.mxu0 0.0
    %51 = vmatpush.msra.mxu0 0.0
    %52 = vmatpush.msra.mxu0 0.0
    %53 = vmatpush.msra.mxu0 0.0
    %54 = vmatpush.msra.mxu0 0.0
    %55 = vmatpush.msra.mxu0 %v23
    %56 = vmatpush.msra.mxu0 %v22
    %57 = vmatpush.msra.mxu0 %v21
    %58 = vmatpush.msra.mxu0 %v20
    %59 = vmatmul.f32.gmra.mxu0 %v38
    %v60 = vpop.f32.mrf.mxu0
    %v61 = vadd.f32 0.0, %v60
    %62 = vmatmul.f32.gmra.mxu0 %v41
    %v63 = vpop.f32.mrf.mxu0
    %v64 = vadd.f32 0.0, %v63
    %65 = vdwg.mxu0
    %66 = vmatpush.msra.mxu0 0.0
    %67 = vmatpush.msra.mxu0 0.0
    %68 = vmatpush.msra.mxu0 0.0
    %69 = vmatpush.msra.mxu0 0.0
    %70 = vmatpush.msra.mxu0 0.0
    %71 = vmatpush.msra.mxu0 0.0
    %72 = vmatpush.msra.mxu0 0.0
    %73 = vmatpush.msra.mxu0 0.0
    %74 = vmatpush.msra.mxu0 0.0
    %75 = vmatpush.msra.mxu0 0.0
    %76 = vmatpush.msra.mxu0 0.0
    %77 = vmatpush.msra.mxu0 0.0
    %78 = vmatpush.msra.mxu0 %v27
    %79 = vmatpush.msra.mxu0 %v26
    %80 = vmatpush.msra.mxu0 %v25
    %81 = vmatpush.msra.mxu0 %v24
    %82 = vmatmul.f32.gmra.mxu0 %v38
    %v83 = vpop.f32.mrf.mxu0
    %v84 = vadd.f32 0.0, %v83
    %85 = vmatmul.f32.gmra.mxu0 %v41
    %v86 = vpop.f32.mrf.mxu0
    %v87 = vadd.f32 0.0, %v86
    %88 = vdwg.mxu0
    %89 = vmatpush.msra.mxu0 0.0
    %90 = vmatpush.msra.mxu0 0.0
    %91 = vmatpush.msra.mxu0 0.0
    %92 = vmatpush.msra.mxu0 0.0
    %93 = vmatpush.msra.mxu0 0.0
    %94 = vmatpush.msra.mxu0 0.0
    %95 = vmatpush.msra.mxu0 0.0
    %96 = vmatpush.msra.mxu0 0.0
    %97 = vmatpush.msra.mxu0 0.0
    %98 = vmatpush.msra.mxu0 0.0
    %99 = vmatpush.msra.mxu0 0.0
    %100 = vmatpush.msra.mxu0 0.0
    %101 = vmatpush.msra.mxu0 %v31
    %102 = vmatpush.msra.mxu0 %v30
    %103 = vmatpush.msra.mxu0 %v29
    %104 = vmatpush.msra.mxu0 %v28
    %105 = vmatmul.f32.gmra.mxu0 %v38
    %v106 = vpop.f32.mrf.mxu0
    %v107 = vadd.f32 0.0, %v106
    %108 = vmatmul.f32.gmra.mxu0 %v41
    %v109 = vpop.f32.mrf.mxu0
    %v110 = vadd.f32 0.0, %v109
    %111 = vdwg.mxu0
    %112 = vmatpush.msra.mxu0 0.0
    %113 = vmatpush.msra.mxu0 0.0
    %114 = vmatpush.msra.mxu0 0.0
    %115 = vmatpush.msra.mxu0 0.0
    %116 = vmatpush.msra.mxu0 0.0
    %117 = vmatpush.msra.mxu0 0.0
    %118 = vmatpush.msra.mxu0 0.0
    %119 = vmatpush.msra.mxu0 0.0
    %120 = vmatpush.msra.mxu0 0.0
    %121 = vmatpush.msra.mxu0 0.0
    %122 = vmatpush.msra.mxu0 0.0
    %123 = vmatpush.msra.mxu0 0.0
    %124 = vmatpush.msra.mxu0 %v35
    %125 = vmatpush.msra.mxu0 %v34
    %126 = vmatpush.msra.mxu0 %v33
    %127 = vmatpush.msra.mxu0 %v32
    %128 = vmatmul.f32.gmra.mxu0 %v38
    %v129 = vpop.f32.mrf.mxu0
    %v130 = vadd.f32 0.0, %v129
    %131 = vmatmul.f32.gmra.mxu0 %v41
    %v132 = vpop.f32.mrf.mxu0
    %v133 = vadd.f32 0.0, %v132
    %134 = vdwg.mxu0
    %136 = vrot.lane.b32.xlu0 %v61, 120
    %v137 = vpop.permute.xlu0 %136
    %vm138 = vcmask 64512
    %v139 = vsel %vm138, %v61, 0
    %v141 = vsel %vm138, %v137, 0
    %143 = vmatpush.xpose.msra.mxu0 0.0
    %144 = vmatpush.xpose.msra.mxu0 0.0
    %145 = vmatpush.xpose.msra.mxu0 0.0
    %146 = vmatpush.xpose.msra.mxu0 0.0
    %147 = vmatpush.xpose.msra.mxu0 0.0
    %148 = vmatpush.xpose.msra.mxu0 0.0
    %149 = vmatpush.xpose.msra.mxu0 0.0
    %150 = vmatpush.xpose.msra.mxu0 0.0
    %151 = vmatpush.xpose.msra.mxu0 0.0
    %152 = vmatpush.xpose.msra.mxu0 0.0
    %153 = vmatpush.xpose.msra.mxu0 0.0
    %154 = vmatpush.xpose.msra.mxu0 0.0
    %155 = vmatpush.xpose.msra.mxu0 0.0
    %156 = vmatpush.xpose.msra.mxu0 0.0
    %157 = vmatpush.xpose.msra.mxu0 0.0
    %158 = vmatpush.xpose.msra.mxu0 %v141
    %159 = vmatmul.f32.gmra.mxu0 %v139
    %v160 = vpop.f32.mrf.mxu0
    %v161 = vadd.f32 0.0, %v160
    %162 = vdwg.mxu0
    %164 = vrot.lane.b32.xlu0 %v64, 120
    %v165 = vpop.permute.xlu0 %164
    %v166 = vsel %vm138, %v64, 0
    %v168 = vsel %vm138, %v165, 0
    %170 = vmatpush.xpose.msra.mxu0 0.0
    %171 = vmatpush.xpose.msra.mxu0 0.0
    %172 = vmatpush.xpose.msra.mxu0 0.0
    %173 = vmatpush.xpose.msra.mxu0 0.0
    %174 = vmatpush.xpose.msra.mxu0 0.0
    %175 = vmatpush.xpose.msra.mxu0 0.0
    %176 = vmatpush.xpose.msra.mxu0 0.0
    %177 = vmatpush.xpose.msra.mxu0 0.0
    %178 = vmatpush.xpose.msra.mxu0 0.0
    %179 = vmatpush.xpose.msra.mxu0 0.0
    %180 = vmatpush.xpose.msra.mxu0 0.0
    %181 = vmatpush.xpose.msra.mxu0 0.0
    %182 = vmatpush.xpose.msra.mxu0 0.0
    %183 = vmatpush.xpose.msra.mxu0 0.0
    %184 = vmatpush.xpose.msra.mxu0 0.0
    %185 = vmatpush.xpose.msra.mxu0 %v168
    %186 = vmatmul.f32.gmra.mxu0 %v166
    %v187 = vpop.f32.mrf.mxu0
    %v188 = vadd.f32 0.0, %v187
    %189 = vdwg.mxu0
    %191 = vrot.lane.b32.xlu0 %v84, 120
    %v192 = vpop.permute.xlu0 %191
    %v193 = vsel %vm138, %v84, 0
    %v195 = vsel %vm138, %v192, 0
    %197 = vmatpush.xpose.msra.mxu0 0.0
    %198 = vmatpush.xpose.msra.mxu0 0.0
    %199 = vmatpush.xpose.msra.mxu0 0.0
    %200 = vmatpush.xpose.msra.mxu0 0.0
    %201 = vmatpush.xpose.msra.mxu0 0.0
    %202 = vmatpush.xpose.msra.mxu0 0.0
    %203 = vmatpush.xpose.msra.mxu0 0.0
    %204 = vmatpush.xpose.msra.mxu0 0.0
    %205 = vmatpush.xpose.msra.mxu0 0.0
    %206 = vmatpush.xpose.msra.mxu0 0.0
    %207 = vmatpush.xpose.msra.mxu0 0.0
    %208 = vmatpush.xpose.msra.mxu0 0.0
    %209 = vmatpush.xpose.msra.mxu0 0.0
    %210 = vmatpush.xpose.msra.mxu0 0.0
    %211 = vmatpush.xpose.msra.mxu0 0.0
    %212 = vmatpush.xpose.msra.mxu0 %v195
    %213 = vmatmul.f32.gmra.mxu0 %v193
    %v214 = vpop.f32.mrf.mxu0
    %v215 = vadd.f32 0.0, %v214
    %216 = vdwg.mxu0
    %218 = vrot.lane.b32.xlu0 %v87, 120
    %v219 = vpop.permute.xlu0 %218
    %v220 = vsel %vm138, %v87, 0
    %v222 = vsel %vm138, %v219, 0
    %224 = vmatpush.xpose.msra.mxu0 0.0
    %225 = vmatpush.xpose.msra.mxu0 0.0
    %226 = vmatpush.xpose.msra.mxu0 0.0
    %227 = vmatpush.xpose.msra.mxu0 0.0
    %228 = vmatpush.xpose.msra.mxu0 0.0
    %229 = vmatpush.xpose.msra.mxu0 0.0
    %230 = vmatpush.xpose.msra.mxu0 0.0
    %231 = vmatpush.xpose.msra.mxu0 0.0
    %232 = vmatpush.xpose.msra.mxu0 0.0
    %233 = vmatpush.xpose.msra.mxu0 0.0
    %234 = vmatpush.xpose.msra.mxu0 0.0
    %235 = vmatpush.xpose.msra.mxu0 0.0
    %236 = vmatpush.xpose.msra.mxu0 0.0
    %237 = vmatpush.xpose.msra.mxu0 0.0
    %238 = vmatpush.xpose.msra.mxu0 0.0
    %239 = vmatpush.xpose.msra.mxu0 %v222
    %240 = vmatmul.f32.gmra.mxu0 %v220
    %v241 = vpop.f32.mrf.mxu0
    %v242 = vadd.f32 0.0, %v241
    %243 = vdwg.mxu0
    %245 = vrot.lane.b32.xlu0 %v107, 120
    %v246 = vpop.permute.xlu0 %245
    %v247 = vsel %vm138, %v107, 0
    %v249 = vsel %vm138, %v246, 0
    %251 = vmatpush.xpose.msra.mxu0 0.0
    %252 = vmatpush.xpose.msra.mxu0 0.0
    %253 = vmatpush.xpose.msra.mxu0 0.0
    %254 = vmatpush.xpose.msra.mxu0 0.0
    %255 = vmatpush.xpose.msra.mxu0 0.0
    %256 = vmatpush.xpose.msra.mxu0 0.0
    %257 = vmatpush.xpose.msra.mxu0 0.0
    %258 = vmatpush.xpose.msra.mxu0 0.0
    %259 = vmatpush.xpose.msra.mxu0 0.0
    %260 = vmatpush.xpose.msra.mxu0 0.0
    %261 = vmatpush.xpose.msra.mxu0 0.0
    %262 = vmatpush.xpose.msra.mxu0 0.0
    %263 = vmatpush.xpose.msra.mxu0 0.0
    %264 = vmatpush.xpose.msra.mxu0 0.0
    %265 = vmatpush.xpose.msra.mxu0 0.0
    %266 = vmatpush.xpose.msra.mxu0 %v249
    %267 = vmatmul.f32.gmra.mxu0 %v247
    %v268 = vpop.f32.mrf.mxu0
    %v269 = vadd.f32 0.0, %v268
    %270 = vdwg.mxu0
    %272 = vrot.lane.b32.xlu0 %v110, 120
    %v273 = vpop.permute.xlu0 %272
    %v274 = vsel %vm138, %v110, 0
    %v276 = vsel %vm138, %v273, 0
    %278 = vmatpush.xpose.msra.mxu0 0.0
    %279 = vmatpush.xpose.msra.mxu0 0.0
    %280 = vmatpush.xpose.msra.mxu0 0.0
    %281 = vmatpush.xpose.msra.mxu0 0.0
    %282 = vmatpush.xpose.msra.mxu0 0.0
    %283 = vmatpush.xpose.msra.mxu0 0.0
    %284 = vmatpush.xpose.msra.mxu0 0.0
    %285 = vmatpush.xpose.msra.mxu0 0.0
    %286 = vmatpush.xpose.msra.mxu0 0.0
    %287 = vmatpush.xpose.msra.mxu0 0.0
    %288 = vmatpush.xpose.msra.mxu0 0.0
    %289 = vmatpush.xpose.msra.mxu0 0.0
    %290 = vmatpush.xpose.msra.mxu0 0.0
    %291 = vmatpush.xpose.msra.mxu0 0.0
    %292 = vmatpush.xpose.msra.mxu0 0.0
    %293 = vmatpush.xpose.msra.mxu0 %v276
    %294 = vmatmul.f32.gmra.mxu0 %v274
    %v295 = vpop.f32.mrf.mxu0
    %v296 = vadd.f32 0.0, %v295
    %297 = vdwg.mxu0
    %299 = vrot.lane.b32.xlu0 %v130, 120
    %v300 = vpop.permute.xlu0 %299
    %v301 = vsel %vm138, %v130, 0
    %v303 = vsel %vm138, %v300, 0
    %305 = vmatpush.xpose.msra.mxu0 0.0
    %306 = vmatpush.xpose.msra.mxu0 0.0
    %307 = vmatpush.xpose.msra.mxu0 0.0
    %308 = vmatpush.xpose.msra.mxu0 0.0
    %309 = vmatpush.xpose.msra.mxu0 0.0
    %310 = vmatpush.xpose.msra.mxu0 0.0
    %311 = vmatpush.xpose.msra.mxu0 0.0
    %312 = vmatpush.xpose.msra.mxu0 0.0
    %313 = vmatpush.xpose.msra.mxu0 0.0
    %314 = vmatpush.xpose.msra.mxu0 0.0
    %315 = vmatpush.xpose.msra.mxu0 0.0
    %316 = vmatpush.xpose.msra.mxu0 0.0
    %317 = vmatpush.xpose.msra.mxu0 0.0
    %318 = vmatpush.xpose.msra.mxu0 0.0
    %319 = vmatpush.xpose.msra.mxu0 0.0
    %320 = vmatpush.xpose.msra.mxu0 %v303
    %321 = vmatmul.f32.gmra.mxu0 %v301
    %v322 = vpop.f32.mrf.mxu0
    %v323 = vadd.f32 0.0, %v322
    %324 = vdwg.mxu0
    %326 = vrot.lane.b32.xlu0 %v133, 120
    %v327 = vpop.permute.xlu0 %326
    %v328 = vsel %vm138, %v133, 0
    %v330 = vsel %vm138, %v327, 0
    %332 = vmatpush.xpose.msra.mxu0 0.0
    %333 = vmatpush.xpose.msra.mxu0 0.0
    %334 = vmatpush.xpose.msra.mxu0 0.0
    %335 = vmatpush.xpose.msra.mxu0 0.0
    %336 = vmatpush.xpose.msra.mxu0 0.0
    %337 = vmatpush.xpose.msra.mxu0 0.0
    %338 = vmatpush.xpose.msra.mxu0 0.0
    %339 = vmatpush.xpose.msra.mxu0 0.0
    %340 = vmatpush.xpose.msra.mxu0 0.0
    %341 = vmatpush.xpose.msra.mxu0 0.0
    %342 = vmatpush.xpose.msra.mxu0 0.0
    %343 = vmatpush.xpose.msra.mxu0 0.0
    %344 = vmatpush.xpose.msra.mxu0 0.0
    %345 = vmatpush.xpose.msra.mxu0 0.0
    %346 = vmatpush.xpose.msra.mxu0 0.0
    %347 = vmatpush.xpose.msra.mxu0 %v330
    %348 = vmatmul.f32.gmra.mxu0 %v328
    %v349 = vpop.f32.mrf.mxu0
    %v350 = vadd.f32 0.0, %v349
    %351 = vdwg.mxu0
    %v352 = vsel %vm138, %v161, -inf
    %353 = vmax.xlane.f32.xlu0 %v352
    %v354 = vpop.xlane.xlu0 %353
    %v355 = vsel %vm138, %v188, -inf
    %356 = vmax.xlane.f32.xlu0 %v355
    %v357 = vpop.xlane.xlu0 %356
    %v358 = vsel %vm138, %v215, -inf
    %359 = vmax.xlane.f32.xlu0 %v358
    %v360 = vpop.xlane.xlu0 %359
    %v361 = vsel %vm138, %v242, -inf
    %362 = vmax.xlane.f32.xlu0 %v361
    %v363 = vpop.xlane.xlu0 %362
    %v364 = vsel %vm138, %v269, -inf
    %365 = vmax.xlane.f32.xlu0 %v364
    %v366 = vpop.xlane.xlu0 %365
    %v367 = vsel %vm138, %v296, -inf
    %368 = vmax.xlane.f32.xlu0 %v367
    %v369 = vpop.xlane.xlu0 %368
    %v370 = vsel %vm138, %v323, -inf
    %371 = vmax.xlane.f32.xlu0 %v370
    %v372 = vpop.xlane.xlu0 %371
    %v373 = vsel %vm138, %v350, -inf
    %374 = vmax.xlane.f32.xlu0 %v373
    %v375 = vpop.xlane.xlu0 %374
    %v376 = vsub.f32 %v161, %v354
    %v377 = vsub.f32 %v188, %v357
    %v378 = vsub.f32 %v215, %v360
    %v379 = vsub.f32 %v242, %v363
    %v380 = vsub.f32 %v269, %v366
    %v381 = vsub.f32 %v296, %v369
    %v382 = vsub.f32 %v323, %v372
    %v383 = vsub.f32 %v350, %v375
    %v384 = vmul.f32 %v376, 1.442695
    %v385 = vpow.pop %v384
    %v386 = vmul.f32 %v377, 1.442695
    %v387 = vpow.pop %v386
    %v388 = vmul.f32 %v378, 1.442695
    %v389 = vpow.pop %v388
    %v390 = vmul.f32 %v379, 1.442695
    %v391 = vpow.pop %v390
    %v392 = vmul.f32 %v380, 1.442695
    %v393 = vpow.pop %v392
    %v394 = vmul.f32 %v381, 1.442695
    %v395 = vpow.pop %v394
    %v396 = vmul.f32 %v382, 1.442695
    %v397 = vpow.pop %v396
    %v398 = vmul.f32 %v383, 1.442695
    %v399 = vpow.pop %v398
    %v400 = vsel %vm138, %v385, 0.0
    %401 = vadd.xlane.f32.xlu0 %v400
    %v402 = vpop.xlane.xlu0 %401
    %v403 = vsel %vm138, %v387, 0.0
    %404 = vadd.xlane.f32.xlu0 %v403
    %v405 = vpop.xlane.xlu0 %404
    %v406 = vsel %vm138, %v389, 0.0
    %407 = vadd.xlane.f32.xlu0 %v406
    %v408 = vpop.xlane.xlu0 %407
    %v409 = vsel %vm138, %v391, 0.0
    %410 = vadd.xlane.f32.xlu0 %v409
    %v411 = vpop.xlane.xlu0 %410
    %v412 = vsel %vm138, %v393, 0.0
    %413 = vadd.xlane.f32.xlu0 %v412
    %v414 = vpop.xlane.xlu0 %413
    %v415 = vsel %vm138, %v395, 0.0
    %416 = vadd.xlane.f32.xlu0 %v415
    %v417 = vpop.xlane.xlu0 %416
    %v418 = vsel %vm138, %v397, 0.0
    %419 = vadd.xlane.f32.xlu0 %v418
    %v420 = vpop.xlane.xlu0 %419
    %v421 = vsel %vm138, %v399, 0.0
    %422 = vadd.xlane.f32.xlu0 %v421
    %v423 = vpop.xlane.xlu0 %422
    %v424 = vrcp.pop %v402
    %v425 = vrcp.pop %v405
    %v426 = vrcp.pop %v408
    %v427 = vrcp.pop %v411
    %v428 = vrcp.pop %v414
    %v429 = vrcp.pop %v417
    %v430 = vrcp.pop %v420
    %v431 = vrcp.pop %v423
    %v432 = vmul.f32 %v385, %v424
    %v433 = vmul.f32 %v387, %v425
    %v434 = vmul.f32 %v389, %v426
    %v435 = vmul.f32 %v391, %v427
    %v436 = vmul.f32 %v393, %v428
    %v437 = vmul.f32 %v395, %v429
    %v438 = vmul.f32 %v397, %v430
    %v439 = vmul.f32 %v399, %v431
    %440 = vrot.lane.b32.xlu0 %v61, 112
    %v441 = vpop.permute.xlu0 %440
    %v444 = vsel %vm138, %v432, 0
    %446 = vmatpush.msra.mxu0 0.0
    %447 = vmatpush.msra.mxu0 0.0
    %448 = vmatpush.msra.mxu0 0.0
    %449 = vmatpush.msra.mxu0 0.0
    %450 = vmatpush.msra.mxu0 0.0
    %451 = vmatpush.msra.mxu0 0.0
    %452 = vmatpush.msra.mxu0 0.0
    %453 = vmatpush.msra.mxu0 0.0
    %454 = vmatpush.msra.mxu0 0.0
    %455 = vmatpush.msra.mxu0 0.0
    %456 = vmatpush.msra.mxu0 0.0
    %457 = vmatpush.msra.mxu0 0.0
    %458 = vmatpush.msra.mxu0 0.0
    %459 = vmatpush.msra.mxu0 0.0
    %460 = vmatpush.msra.mxu0 0.0
    %461 = vmatpush.msra.mxu0 %v441
    %462 = vmatmul.f32.gmra.mxu0 %v444
    %v463 = vpop.f32.mrf.mxu0
    %v464 = vadd.f32 0.0, %v463
    %465 = vdwg.mxu0
    %466 = vrot.lane.b32.xlu0 %v64, 112
    %v467 = vpop.permute.xlu0 %466
    %v470 = vsel %vm138, %v433, 0
    %472 = vmatpush.msra.mxu0 0.0
    %473 = vmatpush.msra.mxu0 0.0
    %474 = vmatpush.msra.mxu0 0.0
    %475 = vmatpush.msra.mxu0 0.0
    %476 = vmatpush.msra.mxu0 0.0
    %477 = vmatpush.msra.mxu0 0.0
    %478 = vmatpush.msra.mxu0 0.0
    %479 = vmatpush.msra.mxu0 0.0
    %480 = vmatpush.msra.mxu0 0.0
    %481 = vmatpush.msra.mxu0 0.0
    %482 = vmatpush.msra.mxu0 0.0
    %483 = vmatpush.msra.mxu0 0.0
    %484 = vmatpush.msra.mxu0 0.0
    %485 = vmatpush.msra.mxu0 0.0
    %486 = vmatpush.msra.mxu0 0.0
    %487 = vmatpush.msra.mxu0 %v467
    %488 = vmatmul.f32.gmra.mxu0 %v470
    %v489 = vpop.f32.mrf.mxu0
    %v490 = vadd.f32 0.0, %v489
    %491 = vdwg.mxu0
    %492 = vrot.lane.b32.xlu0 %v84, 112
    %v493 = vpop.permute.xlu0 %492
    %v496 = vsel %vm138, %v434, 0
    %498 = vmatpush.msra.mxu0 0.0
    %499 = vmatpush.msra.mxu0 0.0
    %500 = vmatpush.msra.mxu0 0.0
    %501 = vmatpush.msra.mxu0 0.0
    %502 = vmatpush.msra.mxu0 0.0
    %503 = vmatpush.msra.mxu0 0.0
    %504 = vmatpush.msra.mxu0 0.0
    %505 = vmatpush.msra.mxu0 0.0
    %506 = vmatpush.msra.mxu0 0.0
    %507 = vmatpush.msra.mxu0 0.0
    %508 = vmatpush.msra.mxu0 0.0
    %509 = vmatpush.msra.mxu0 0.0
    %510 = vmatpush.msra.mxu0 0.0
    %511 = vmatpush.msra.mxu0 0.0
    %512 = vmatpush.msra.mxu0 0.0
    %513 = vmatpush.msra.mxu0 %v493
    %514 = vmatmul.f32.gmra.mxu0 %v496
    %v515 = vpop.f32.mrf.mxu0
    %v516 = vadd.f32 0.0, %v515
    %517 = vdwg.mxu0
    %518 = vrot.lane.b32.xlu0 %v87, 112
    %v519 = vpop.permute.xlu0 %518
    %v522 = vsel %vm138, %v435, 0
    %524 = vmatpush.msra.mxu0 0.0
    %525 = vmatpush.msra.mxu0 0.0
    %526 = vmatpush.msra.mxu0 0.0
    %527 = vmatpush.msra.mxu0 0.0
    %528 = vmatpush.msra.mxu0 0.0
    %529 = vmatpush.msra.mxu0 0.0
    %530 = vmatpush.msra.mxu0 0.0
    %531 = vmatpush.msra.mxu0 0.0
    %532 = vmatpush.msra.mxu0 0.0
    %533 = vmatpush.msra.mxu0 0.0
    %534 = vmatpush.msra.mxu0 0.0
    %535 = vmatpush.msra.mxu0 0.0
    %536 = vmatpush.msra.mxu0 0.0
    %537 = vmatpush.msra.mxu0 0.0
    %538 = vmatpush.msra.mxu0 0.0
    %539 = vmatpush.msra.mxu0 %v519
    %540 = vmatmul.f32.gmra.mxu0 %v522
    %v541 = vpop.f32.mrf.mxu0
    %v542 = vadd.f32 0.0, %v541
    %543 = vdwg.mxu0
    %544 = vrot.lane.b32.xlu0 %v107, 112
    %v545 = vpop.permute.xlu0 %544
    %v548 = vsel %vm138, %v436, 0
    %550 = vmatpush.msra.mxu0 0.0
    %551 = vmatpush.msra.mxu0 0.0
    %552 = vmatpush.msra.mxu0 0.0
    %553 = vmatpush.msra.mxu0 0.0
    %554 = vmatpush.msra.mxu0 0.0
    %555 = vmatpush.msra.mxu0 0.0
    %556 = vmatpush.msra.mxu0 0.0
    %557 = vmatpush.msra.mxu0 0.0
    %558 = vmatpush.msra.mxu0 0.0
    %559 = vmatpush.msra.mxu0 0.0
    %560 = vmatpush.msra.mxu0 0.0
    %561 = vmatpush.msra.mxu0 0.0
    %562 = vmatpush.msra.mxu0 0.0
    %563 = vmatpush.msra.mxu0 0.0
    %564 = vmatpush.msra.mxu0 0.0
    %565 = vmatpush.msra.mxu0 %v545
    %566 = vmatmul.f32.gmra.mxu0 %v548
    %v567 = vpop.f32.mrf.mxu0
    %v568 = vadd.f32 0.0, %v567
    %569 = vdwg.mxu0
    %570 = vrot.lane.b32.xlu0 %v110, 112
    %v571 = vpop.permute.xlu0 %570
    %v574 = vsel %vm138, %v437, 0
    %576 = vmatpush.msra.mxu0 0.0
    %577 = vmatpush.msra.mxu0 0.0
    %578 = vmatpush.msra.mxu0 0.0
    %579 = vmatpush.msra.mxu0 0.0
    %580 = vmatpush.msra.mxu0 0.0
    %581 = vmatpush.msra.mxu0 0.0
    %582 = vmatpush.msra.mxu0 0.0
    %583 = vmatpush.msra.mxu0 0.0
    %584 = vmatpush.msra.mxu0 0.0
    %585 = vmatpush.msra.mxu0 0.0
    %586 = vmatpush.msra.mxu0 0.0
    %587 = vmatpush.msra.mxu0 0.0
    %588 = vmatpush.msra.mxu0 0.0
    %589 = vmatpush.msra.mxu0 0.0
    %590 = vmatpush.msra.mxu0 0.0
    %591 = vmatpush.msra.mxu0 %v571
    %592 = vmatmul.f32.gmra.mxu0 %v574
    %v593 = vpop.f32.mrf.mxu0
    %v594 = vadd.f32 0.0, %v593
    %595 = vdwg.mxu0
    %596 = vrot.lane.b32.xlu0 %v130, 112
    %v597 = vpop.permute.xlu0 %596
    %v600 = vsel %vm138, %v438, 0
    %602 = vmatpush.msra.mxu0 0.0
    %603 = vmatpush.msra.mxu0 0.0
    %604 = vmatpush.msra.mxu0 0.0
    %605 = vmatpush.msra.mxu0 0.0
    %606 = vmatpush.msra.mxu0 0.0
    %607 = vmatpush.msra.mxu0 0.0
    %608 = vmatpush.msra.mxu0 0.0
    %609 = vmatpush.msra.mxu0 0.0
    %610 = vmatpush.msra.mxu0 0.0
    %611 = vmatpush.msra.mxu0 0.0
    %612 = vmatpush.msra.mxu0 0.0
    %613 = vmatpush.msra.mxu0 0.0
    %614 = vmatpush.msra.mxu0 0.0
    %615 = vmatpush.msra.mxu0 0.0
    %616 = vmatpush.msra.mxu0 0.0
    %617 = vmatpush.msra.mxu0 %v597
    %618 = vmatmul.f32.gmra.mxu0 %v600
    %v619 = vpop.f32.mrf.mxu0
    %v620 = vadd.f32 0.0, %v619
    %621 = vdwg.mxu0
    %622 = vrot.lane.b32.xlu0 %v133, 112
    %v623 = vpop.permute.xlu0 %622
    %v626 = vsel %vm138, %v439, 0
    %628 = vmatpush.msra.mxu0 0.0
    %629 = vmatpush.msra.mxu0 0.0
    %630 = vmatpush.msra.mxu0 0.0
    %631 = vmatpush.msra.mxu0 0.0
    %632 = vmatpush.msra.mxu0 0.0
    %633 = vmatpush.msra.mxu0 0.0
    %634 = vmatpush.msra.mxu0 0.0
    %635 = vmatpush.msra.mxu0 0.0
    %636 = vmatpush.msra.mxu0 0.0
    %637 = vmatpush.msra.mxu0 0.0
    %638 = vmatpush.msra.mxu0 0.0
    %639 = vmatpush.msra.mxu0 0.0
    %640 = vmatpush.msra.mxu0 0.0
    %641 = vmatpush.msra.mxu0 0.0
    %642 = vmatpush.msra.mxu0 0.0
    %643 = vmatpush.msra.mxu0 %v623
    %644 = vmatmul.f32.gmra.mxu0 %v626
    %v645 = vpop.f32.mrf.mxu0
    %v646 = vadd.f32 0.0, %v645
    %647 = vdwg.mxu0
    %v648 = vld [vmem:[%s2] sm:$0xff]
    %v649 = vld [vmem:[%s2 + $0x8] sm:$0xff]
    %v650 = vld [vmem:[%s2 + $0x10] sm:$0xff]
    %v651 = vld [vmem:[%s2 + $0x18] sm:$0xff]
    %v653 = vsel %vm138, %v464, 0
    %v656 = vsel %vm138, %v490, 0
    %658 = vmatpush.msra.mxu0 0.0
    %659 = vmatpush.msra.mxu0 0.0
    %660 = vmatpush.msra.mxu0 0.0
    %661 = vmatpush.msra.mxu0 0.0
    %662 = vmatpush.msra.mxu0 0.0
    %663 = vmatpush.msra.mxu0 0.0
    %664 = vmatpush.msra.mxu0 0.0
    %665 = vmatpush.msra.mxu0 0.0
    %666 = vmatpush.msra.mxu0 0.0
    %667 = vmatpush.msra.mxu0 0.0
    %668 = vmatpush.msra.mxu0 0.0
    %669 = vmatpush.msra.mxu0 0.0
    %670 = vmatpush.msra.mxu0 0.0
    %671 = vmatpush.msra.mxu0 0.0
    %672 = vmatpush.msra.mxu0 0.0
    %673 = vmatpush.msra.mxu0 %v648
    %674 = vmatmul.f32.gmra.mxu0 %v653
    %v675 = vpop.f32.mrf.mxu0
    %v676 = vadd.f32 0.0, %v675
    %677 = vmatmul.f32.gmra.mxu0 %v656
    %v678 = vpop.f32.mrf.mxu0
    %v679 = vadd.f32 0.0, %v678
    %680 = vdwg.mxu0
    %v682 = vsel %vm138, %v516, 0
    %v685 = vsel %vm138, %v542, 0
    %687 = vmatpush.msra.mxu0 0.0
    %688 = vmatpush.msra.mxu0 0.0
    %689 = vmatpush.msra.mxu0 0.0
    %690 = vmatpush.msra.mxu0 0.0
    %691 = vmatpush.msra.mxu0 0.0
    %692 = vmatpush.msra.mxu0 0.0
    %693 = vmatpush.msra.mxu0 0.0
    %694 = vmatpush.msra.mxu0 0.0
    %695 = vmatpush.msra.mxu0 0.0
    %696 = vmatpush.msra.mxu0 0.0
    %697 = vmatpush.msra.mxu0 0.0
    %698 = vmatpush.msra.mxu0 0.0
    %699 = vmatpush.msra.mxu0 0.0
    %700 = vmatpush.msra.mxu0 0.0
    %701 = vmatpush.msra.mxu0 0.0
    %702 = vmatpush.msra.mxu0 %v649
    %703 = vmatmul.f32.gmra.mxu0 %v682
    %v704 = vpop.f32.mrf.mxu0
    %v705 = vadd.f32 0.0, %v704
    %706 = vmatmul.f32.gmra.mxu0 %v685
    %v707 = vpop.f32.mrf.mxu0
    %v708 = vadd.f32 0.0, %v707
    %709 = vdwg.mxu0
    %v711 = vsel %vm138, %v568, 0
    %v714 = vsel %vm138, %v594, 0
    %716 = vmatpush.msra.mxu0 0.0
    %717 = vmatpush.msra.mxu0 0.0
    %718 = vmatpush.msra.mxu0 0.0
    %719 = vmatpush.msra.mxu0 0.0
    %720 = vmatpush.msra.mxu0 0.0
    %721 = vmatpush.msra.mxu0 0.0
    %722 = vmatpush.msra.mxu0 0.0
    %723 = vmatpush.msra.mxu0 0.0
    %724 = vmatpush.msra.mxu0 0.0
    %725 = vmatpush.msra.mxu0 0.0
    %726 = vmatpush.msra.mxu0 0.0
    %727 = vmatpush.msra.mxu0 0.0
    %728 = vmatpush.msra.mxu0 0.0
    %729 = vmatpush.msra.mxu0 0.0
    %730 = vmatpush.msra.mxu0 0.0
    %731 = vmatpush.msra.mxu0 %v650
    %732 = vmatmul.f32.gmra.mxu0 %v711
    %v733 = vpop.f32.mrf.mxu0
    %v734 = vadd.f32 0.0, %v733
    %735 = vmatmul.f32.gmra.mxu0 %v714
    %v736 = vpop.f32.mrf.mxu0
    %v737 = vadd.f32 0.0, %v736
    %738 = vdwg.mxu0
    %v740 = vsel %vm138, %v620, 0
    %v743 = vsel %vm138, %v646, 0
    %745 = vmatpush.msra.mxu0 0.0
    %746 = vmatpush.msra.mxu0 0.0
    %747 = vmatpush.msra.mxu0 0.0
    %748 = vmatpush.msra.mxu0 0.0
    %749 = vmatpush.msra.mxu0 0.0
    %750 = vmatpush.msra.mxu0 0.0
    %751 = vmatpush.msra.mxu0 0.0
    %752 = vmatpush.msra.mxu0 0.0
    %753 = vmatpush.msra.mxu0 0.0
    %754 = vmatpush.msra.mxu0 0.0
    %755 = vmatpush.msra.mxu0 0.0
    %756 = vmatpush.msra.mxu0 0.0
    %757 = vmatpush.msra.mxu0 0.0
    %758 = vmatpush.msra.mxu0 0.0
    %759 = vmatpush.msra.mxu0 0.0
    %760 = vmatpush.msra.mxu0 %v651
    %761 = vmatmul.f32.gmra.mxu0 %v740
    %v762 = vpop.f32.mrf.mxu0
    %v763 = vadd.f32 0.0, %v762
    %764 = vmatmul.f32.gmra.mxu0 %v743
    %v765 = vpop.f32.mrf.mxu0
    %v766 = vadd.f32 0.0, %v765
    %767 = vdwg.mxu0
    %v768 = vsel %vm36, %v676, 0.0
    %v769 = vsel %vm36, %v705, 0.0
    %v770 = vadd.f32 %v768, %v769
    %v771 = vsel %vm36, %v734, 0.0
    %v772 = vadd.f32 %v770, %v771
    %v773 = vsel %vm36, %v763, 0.0
    %v774 = vadd.f32 %v772, %v773
    %v775 = vsel %vm36, %v679, 0.0
    %v776 = vsel %vm36, %v708, 0.0
    %v777 = vadd.f32 %v775, %v776
    %v778 = vsel %vm36, %v737, 0.0
    %v779 = vadd.f32 %v777, %v778
    %v780 = vsel %vm36, %v766, 0.0
    %v781 = vadd.f32 %v779, %v780
    %v782 = vld [vmem:[%s3] sm:$0x1]
    %v784 = vperm.slane %v782, 0
    %v786 = vadd.f32 %v774, %v784
    %v787 = vadd.f32 %v781, %v784
    %788 = vst.msk [vmem:[#allocation2] sm:$0xff] %vm36, %v786
    %789 = vst.msk [vmem:[#allocation2 + $0x8] sm:$0xff] %vm36, %v787
    // Predicated region
    $region18: #{tpu_custom_call.1} parent=1 // pred_check
      _
    $region19: #{tpu_custom_call.1} parent=1 // pred_check_branch
      %791 = sbr.rel (0) target = $region21
    $region20: #{tpu_custom_call.1} parent=1 // pred_region
      %793 = vsyncadd [#allocation3], 0
      %s794 = sshll.u32 [#allocation2], 4
      %s795 = int_to_ptr.vmem [resolvable:$true] %s794
      %s796 = sshll.u32 %s4, 4
      %s797 = int_to_ptr.hbm [resolvable:$true] %s796
      %802 = dma.vmem_to_hbm [thread:$0]  %s795, 256, %s797, [#allocation3], 128, 128, 8
    $region21: #{tpu_custom_call.1} parent=1 // pred_fallthru
      _
    // Predicated region
    $region22: #{tpu_custom_call.1} parent=1 // pred_check
      _
    $region23: #{tpu_custom_call.1} parent=1 // pred_check_branch
      %804 = sbr.rel (0) target = $region25
    $region24: #{tpu_custom_call.1} parent=1 // pred_region
      %806 = dma.done [#allocation3], 256
    $region25: #{tpu_custom_call.1} parent=1 // pred_fallthru
      _
    %807 = vsyncpa [#allocation3], 1

</llo_original>
